<compile_context>
chip_gen: v7x
topology: tpu7x:2x2x1
jax: 0.10.0
libtpu: 0.0.40
codegen_flags: <defaults>
</compile_context>

<pallas_src>
import jax
import jax.numpy as jnp
from jax.experimental import pallas as pl
from jax.experimental.pallas import tpu as pltpu

L = 19           # sequence length (fixed by the module: Linear(19*6, 2))
C_IN = 52        # conv in_channels
C_OUT = 6        # conv out_channels
N_CLS = 2        # linear out_features
D_IN = L * C_IN      # 988
D_HID = L * C_OUT    # 114

# Conservative max batch tile: double-buffered x tile (2 * 512 * 1024 * 4B
# ~= 4 MiB) + ~0.5 MiB resident weights fits the 16 MiB v5e default scoped
# VMEM; on v6e/v7x this could be raised (sweep 512-1024/2048).
MAX_TILE_B = 512


def cnn_kernel(x_ref, w1_ref, b1_ref, w2_ref, b2_ref, o_ref):
    # x_ref : (TILE_B, D_IN)   per-sample flatten order l*C_IN + c
    # w1_ref: (D_IN, D_HID)    block-diagonal conv weight (19 copies of (52, 6))
    # b1_ref: (1, D_HID)       conv bias tiled per position
    # w2_ref: (D_HID, N_CLS)   linear weight, permuted to flatten order l*C_OUT + o
    # b2_ref: (1, N_CLS)
    # o_ref : (TILE_B, N_CLS)
    h = jnp.dot(x_ref[...], w1_ref[...], preferred_element_type=jnp.float32)
    h = jnp.maximum(h + b1_ref[...], 0.0)            # Conv1d(k=1) + ReLU, lane-dense
    out = jnp.dot(h, w2_ref[...], preferred_element_type=jnp.float32) + b2_ref[...]
    o_ref[...] = out.astype(o_ref.dtype)


def cnn_forward(x, w1_conv, b1_conv, w2_lin, b2_lin):
    """x: (B, L=19, C=52) float32 -- the ORIGINAL PyTorch input layout before
    the module's internal permute(0,2,1).  Params in PyTorch conventions:
       w1_conv: (C_OUT, C_IN, 1), b1_conv: (C_OUT,),
       w2_lin : (N_CLS, L*C_OUT), b2_lin : (N_CLS,)."""
    B = x.shape[0]

    # --- wrapper-side layout prep (plain JAX) ---
    # Lane-dense 2-D input: (B, 988), flatten order l*C_IN + c.
    x2d = x.reshape(B, D_IN)

    # Block-diagonal conv weight: W1_blk[l*C_IN+c, m*C_OUT+o] = (l==m) * w1[c, o].
    # Folds the per-position conv into a single 2-D matmul (no in-kernel reshape).
    w1 = jnp.transpose(w1_conv[:, :, 0], (1, 0))                    # (C_IN, C_OUT)
    eye = jnp.eye(L, dtype=w1.dtype)
    w1_blk = jnp.einsum('lm,co->lcmo', eye, w1).reshape(D_IN, D_HID)
    b1 = jnp.tile(b1_conv, L).reshape(1, D_HID)                     # index l*C_OUT+o -> b1[o]

    # PyTorch flatten order of conv output (B, C_OUT, L) is o*L + l;
    # our h flatten order is l*C_OUT + o.  Permute the linear weight to match.
    w2 = jnp.transpose(w2_lin, (1, 0))                              # (114, 2), idx o*L+l
    w2 = w2.reshape(C_OUT, L, N_CLS).transpose(1, 0, 2).reshape(D_HID, N_CLS)
    b2 = b2_lin.reshape(1, N_CLS)

    # --- batch-tiled grid with resident weights + double-buffered x stream ---
    tile_b = B if B <= MAX_TILE_B else MAX_TILE_B
    grid = (pl.cdiv(B, tile_b),)

    def weight_spec(shape):
        return pl.BlockSpec(shape, lambda i: (0, 0))   # constant block -> DMA'd once

    return pl.pallas_call(
        cnn_kernel,
        out_shape=jax.ShapeDtypeStruct((B, N_CLS), jnp.float32),
        grid=grid,
        in_specs=[
            pl.BlockSpec((tile_b, D_IN), lambda i: (i, 0)),   # x: streamed per batch tile
            weight_spec((D_IN, D_HID)),
            weight_spec((1, D_HID)),
            weight_spec((D_HID, N_CLS)),
            weight_spec((1, N_CLS)),
        ],
        out_specs=pl.BlockSpec((tile_b, N_CLS), lambda i: (i, 0)),
        compiler_params=pltpu.CompilerParams(
            dimension_semantics=("parallel",),   # megacore-shard batch tiles (v7x: 2 TCs)
        ),
    )(x2d, w1_blk, b1, w2, b2)


def reference_forward(x, w1_conv, b1_conv, w2_lin, b2_lin):
    """Pure-JAX replica of the PyTorch forward for verification."""
    xp = jnp.transpose(x, (0, 2, 1))                                # (B, C_IN, L)
    conv = jnp.einsum('bcl,oc->bol', xp, w1_conv[:, :, 0]) + b1_conv[None, :, None]
    conv = jnp.maximum(conv, 0.0)                                   # (B, C_OUT, L)
    flat = conv.reshape(conv.shape[0], -1)                          # (B, C_OUT*L)
    return flat @ w2_lin.T + b2_lin[None, :]


if __name__ == "__main__":
    key = jax.random.PRNGKey(0)
    kx, k1, k2, k3, k4 = jax.random.split(key, 5)

    B = 2
    x = jax.random.normal(kx, (B, L, C_IN), dtype=jnp.float32)

    # Deterministic parameter init (synthetic, matching module shapes).
    w1_conv = 0.1 * jax.random.normal(k1, (C_OUT, C_IN, 1), dtype=jnp.float32)
    b1_conv = 0.1 * jax.random.normal(k2, (C_OUT,), dtype=jnp.float32)
    w2_lin = 0.1 * jax.random.normal(k3, (N_CLS, L * C_OUT), dtype=jnp.float32)
    b2_lin = 0.1 * jax.random.normal(k4, (N_CLS,), dtype=jnp.float32)

    out = cnn_forward(x, w1_conv, b1_conv, w2_lin, b2_lin)
    jax.block_until_ready(out)

    ref = reference_forward(x, w1_conv, b1_conv, w2_lin, b2_lin)
    assert out.shape == (B, N_CLS)
    assert jnp.allclose(out, ref, atol=1e-4, rtol=1e-4), (out, ref)

    print("KERNEL_OK")
</pallas_src>

<mosaic_0001>
module attributes {stable_mosaic.version = 11 : i64} {
  func.func @cnn_kernel(%arg0: i32, %arg1: memref<2x988xf32, #tpu.memory_space<vmem>>, %arg2: memref<988x114xf32, #tpu.memory_space<vmem>>, %arg3: memref<1x114xf32, #tpu.memory_space<vmem>>, %arg4: memref<114x2xf32, #tpu.memory_space<vmem>>, %arg5: memref<1x2xf32, #tpu.memory_space<vmem>>, %arg6: memref<2x2xf32, #tpu.memory_space<vmem>>) attributes {dimension_semantics = [#tpu.dimension_semantics<parallel>], iteration_bounds = array<i64: 1>, scalar_prefetch = 0 : i64, scratch_operands = 0 : i64, tpu.core_type = #tpu.core_type<tc>, window_params = [{transform_indices = @transform_0, window_bounds = array<i64: 2, 988>}, {pipeline_mode = #tpu.pipeline_mode<synchronous>, transform_indices = @transform_1, window_bounds = array<i64: 988, 114>}, {pipeline_mode = #tpu.pipeline_mode<synchronous>, transform_indices = @transform_2, window_bounds = array<i64: 1, 114>}, {pipeline_mode = #tpu.pipeline_mode<synchronous>, transform_indices = @transform_3, window_bounds = array<i64: 114, 2>}, {pipeline_mode = #tpu.pipeline_mode<synchronous>, transform_indices = @transform_4, window_bounds = array<i64: 1, 2>}, {transform_indices = @transform_5, window_bounds = array<i64: 2, 2>}]} {
    %c0 = arith.constant 0 : index
    %c0_0 = arith.constant 0 : index
    %0 = vector.load %arg1[%c0, %c0_0] : memref<2x988xf32, #tpu.memory_space<vmem>>, vector<2x988xf32>
    %c0_1 = arith.constant 0 : index
    %c0_2 = arith.constant 0 : index
    %1 = vector.load %arg2[%c0_1, %c0_2] : memref<988x114xf32, #tpu.memory_space<vmem>>, vector<988x114xf32>
    %cst = arith.constant dense<0.000000e+00> : vector<2x114xf32>
    %2 = tpu.matmul %0, %1, %cst {dimension_numbers = #tpu.dot_dimension_numbers<[1], [0], [0], [1], [0, 0, 1, 1], [], []>} : vector<2x988xf32>, vector<988x114xf32>, vector<2x114xf32> -> vector<2x114xf32>
    %c0_3 = arith.constant 0 : index
    %c0_4 = arith.constant 0 : index
    %3 = vector.load %arg3[%c0_3, %c0_4] : memref<1x114xf32, #tpu.memory_space<vmem>>, vector<1x114xf32>
    %4 = vector.broadcast %3 : vector<1x114xf32> to vector<2x114xf32>
    %5 = arith.addf %2, %4 : vector<2x114xf32>
    %cst_5 = arith.constant 0.000000e+00 : f32
    %6 = vector.broadcast %cst_5 : f32 to vector<2x114xf32>
    %7 = arith.maximumf %5, %6 : vector<2x114xf32>
    %c0_6 = arith.constant 0 : index
    %c0_7 = arith.constant 0 : index
    %8 = vector.load %arg4[%c0_6, %c0_7] : memref<114x2xf32, #tpu.memory_space<vmem>>, vector<114x2xf32>
    %cst_8 = arith.constant dense<0.000000e+00> : vector<2x2xf32>
    %9 = tpu.matmul %7, %8, %cst_8 {dimension_numbers = #tpu.dot_dimension_numbers<[1], [0], [0], [1], [0, 0, 1, 1], [], []>} : vector<2x114xf32>, vector<114x2xf32>, vector<2x2xf32> -> vector<2x2xf32>
    %c0_9 = arith.constant 0 : index
    %c0_10 = arith.constant 0 : index
    %10 = vector.load %arg5[%c0_9, %c0_10] : memref<1x2xf32, #tpu.memory_space<vmem>>, vector<1x2xf32>
    %11 = vector.broadcast %10 : vector<1x2xf32> to vector<2x2xf32>
    %12 = arith.addf %9, %11 : vector<2x2xf32>
    %c0_11 = arith.constant 0 : index
    %c0_12 = arith.constant 0 : index
    %13 = vector.load %arg6[%c0_11, %c0_12] : memref<2x2xf32, #tpu.memory_space<vmem>>, vector<2x2xf32>
    tpu.vector_store %arg6[%c0_11, %c0_12], %12 {strides = array<i32>} : memref<2x2xf32, #tpu.memory_space<vmem>>, vector<2x2xf32>,
    return
  }
  func.func @transform_0(%arg0: i32) -> (i32, i32) {
    %c0_i32 = arith.constant 0 : i32
    %c0_i32_0 = arith.constant 0 : i32
    return %arg0, %c0_i32 : i32, i32
  }
  func.func @transform_1(%arg0: i32) -> (i32, i32) {
    %c0_i32 = arith.constant 0 : i32
    %c0_i32_0 = arith.constant 0 : i32
    %c0_i32_1 = arith.constant 0 : i32
    return %c0_i32, %c0_i32_0 : i32, i32
  }
  func.func @transform_2(%arg0: i32) -> (i32, i32) {
    %c0_i32 = arith.constant 0 : i32
    %c0_i32_0 = arith.constant 0 : i32
    %c0_i32_1 = arith.constant 0 : i32
    return %c0_i32, %c0_i32_0 : i32, i32
  }
  func.func @transform_3(%arg0: i32) -> (i32, i32) {
    %c0_i32 = arith.constant 0 : i32
    %c0_i32_0 = arith.constant 0 : i32
    %c0_i32_1 = arith.constant 0 : i32
    return %c0_i32, %c0_i32_0 : i32, i32
  }
  func.func @transform_4(%arg0: i32) -> (i32, i32) {
    %c0_i32 = arith.constant 0 : i32
    %c0_i32_0 = arith.constant 0 : i32
    %c0_i32_1 = arith.constant 0 : i32
    return %c0_i32, %c0_i32_0 : i32, i32
  }
  func.func @transform_5(%arg0: i32) -> (i32, i32) {
    %c0_i32 = arith.constant 0 : i32
    %c0_i32_0 = arith.constant 0 : i32
    return %arg0, %c0_i32 : i32, i32
  }
}

</mosaic_0001>

<llo_original>
// kernel: tpu_custom_call.1
$region0: #{tpu_custom_call.1}
  #allocation0 [shape = 'u32[]', space=smem, size = 0x4, offset = 0x4, fixed_abs, tag = 'smem constant byte address 0x4 - core index']
  #allocation1 [shape = 'u32[144,128]{1,0:T(1,128)}', space=vmem, size = 0x12000, scoped, tag = 'internal scratch']
  %s0 = inlined_call_operand.vmem [shape: f32[2,988], index: 0, kind: input, shape index: {}]
  %s1 = inlined_call_operand.vmem [shape: f32[988,114], index: 1, kind: input, shape index: {}]
  %s2 = inlined_call_operand.vmem [shape: f32[1,114], index: 2, kind: input, shape index: {}]
  %s3 = inlined_call_operand.vmem [shape: f32[114,2], index: 3, kind: input, shape index: {}]
  %s4 = inlined_call_operand.vmem [shape: f32[1,2], index: 4, kind: input, shape index: {}]
  %s5 = inlined_call_operand.hbm [shape: f32[2,2], index: 5, kind: output, shape index: {}]
  %s6 = sld [smem:[#allocation0]]
  $region30: #{tpu_custom_call.1} parent=0
    _
  %s8 = ssub.s32 1, %s6
  %s9 = scalar_select 0, %s8, %s6
  $region1: #{tpu_custom_call.1} parent=0
    #allocation2 [shape = 'u8[1024]{0}', space=vmem, size = 0x400, scoped, tag = 'output window, operand 0, single buffered']
    #allocation3 [shape = 's32[1]{0}', space=sflag, size = 0x4, scoped, tag = 'scoped memory for tpu_custom_call.1']
    %10 = vsyncpa [#allocation3], 0
    // Predicated region
    $region2: #{tpu_custom_call.1} parent=1 // pred_check
      _
    $region3: #{tpu_custom_call.1} parent=1 // pred_check_branch
      %12 = sbr.rel (0) target = $region5
    $region4: #{tpu_custom_call.1} parent=1 // pred_region
      _
    $region5: #{tpu_custom_call.1} parent=1 // pred_fallthru
      _
    // Predicated region
    $region6: #{tpu_custom_call.1} parent=1 // pred_check
      _
    $region7: #{tpu_custom_call.1} parent=1 // pred_check_branch
      %14 = sbr.rel (0) target = $region9
    $region8: #{tpu_custom_call.1} parent=1 // pred_region
      _
    $region9: #{tpu_custom_call.1} parent=1 // pred_fallthru
      _
    // Predicated region
    $region10: #{tpu_custom_call.1} parent=1 // pred_check
      _
    $region11: #{tpu_custom_call.1} parent=1 // pred_check_branch
      %16 = sbr.rel (0) target = $region13
    $region12: #{tpu_custom_call.1} parent=1 // pred_region
      _
    $region13: #{tpu_custom_call.1} parent=1 // pred_fallthru
      _
    // Predicated region
    $region14: #{tpu_custom_call.1} parent=1 // pred_check
      _
    $region15: #{tpu_custom_call.1} parent=1 // pred_check_branch
      %18 = sbr.rel (0) target = $region17
    $region16: #{tpu_custom_call.1} parent=1 // pred_region
      _
    $region17: #{tpu_custom_call.1} parent=1 // pred_fallthru
      _
    // Predicated region
    $region18: #{tpu_custom_call.1} parent=1 // pred_check
      _
    $region19: #{tpu_custom_call.1} parent=1 // pred_check_branch
      %20 = sbr.rel (0) target = $region21
    $region20: #{tpu_custom_call.1} parent=1 // pred_region
      _
    $region21: #{tpu_custom_call.1} parent=1 // pred_fallthru
      _
    %v21 = vld [vmem:[%s0] sm:$0xff]
    %v22 = vld [vmem:[%s0 + $0x8] sm:$0xff]
    %v23 = vld [vmem:[%s1] sm:$0xff]
    %v24 = vld [vmem:[%s1 + $0x8] sm:$0xff]
    %v25 = vld [vmem:[%s1 + $0x10] sm:$0xff]
    %v26 = vld [vmem:[%s1 + $0x18] sm:$0xff]
    %v27 = vld [vmem:[%s1 + $0x20] sm:$0xff]
    %v28 = vld [vmem:[%s1 + $0x28] sm:$0xff]
    %v29 = vld [vmem:[%s1 + $0x30] sm:$0xff]
    %v30 = vld [vmem:[%s1 + $0x38] sm:$0xff]
    %v31 = vld [vmem:[%s1 + $0x40] sm:$0xff]
    %v32 = vld [vmem:[%s1 + $0x48] sm:$0xff]
    %v33 = vld [vmem:[%s1 + $0x50] sm:$0xff]
    %v34 = vld [vmem:[%s1 + $0x58] sm:$0xff]
    %v35 = vld [vmem:[%s1 + $0x60] sm:$0xff]
    %v36 = vld [vmem:[%s1 + $0x68] sm:$0xff]
    %v37 = vld [vmem:[%s1 + $0x70] sm:$0xff]
    %v38 = vld [vmem:[%s1 + $0x78] sm:$0xff]
    %v39 = vld [vmem:[%s1 + $0x80] sm:$0xff]
    %v40 = vld [vmem:[%s1 + $0x88] sm:$0xff]
    %v41 = vld [vmem:[%s1 + $0x90] sm:$0xff]
    %v42 = vld [vmem:[%s1 + $0x98] sm:$0xff]
    %v43 = vld [vmem:[%s1 + $0xa0] sm:$0xff]
    %v44 = vld [vmem:[%s1 + $0xa8] sm:$0xff]
    %v45 = vld [vmem:[%s1 + $0xb0] sm:$0xff]
    %v46 = vld [vmem:[%s1 + $0xb8] sm:$0xff]
    %v47 = vld [vmem:[%s1 + $0xc0] sm:$0xff]
    %v48 = vld [vmem:[%s1 + $0xc8] sm:$0xff]
    %v49 = vld [vmem:[%s1 + $0xd0] sm:$0xff]
    %v50 = vld [vmem:[%s1 + $0xd8] sm:$0xff]
    %v51 = vld [vmem:[%s1 + $0xe0] sm:$0xff]
    %v52 = vld [vmem:[%s1 + $0xe8] sm:$0xff]
    %v53 = vld [vmem:[%s1 + $0xf0] sm:$0xff]
    %v54 = vld [vmem:[%s1 + $0xf8] sm:$0xff]
    %v55 = vld [vmem:[%s1 + $0x100] sm:$0xff]
    %v56 = vld [vmem:[%s1 + $0x108] sm:$0xff]
    %v57 = vld [vmem:[%s1 + $0x110] sm:$0xff]
    %v58 = vld [vmem:[%s1 + $0x118] sm:$0xff]
    %v59 = vld [vmem:[%s1 + $0x120] sm:$0xff]
    %v60 = vld [vmem:[%s1 + $0x128] sm:$0xff]
    %v61 = vld [vmem:[%s1 + $0x130] sm:$0xff]
    %v62 = vld [vmem:[%s1 + $0x138] sm:$0xff]
    %v63 = vld [vmem:[%s1 + $0x140] sm:$0xff]
    %v64 = vld [vmem:[%s1 + $0x148] sm:$0xff]
    %v65 = vld [vmem:[%s1 + $0x150] sm:$0xff]
    %v66 = vld [vmem:[%s1 + $0x158] sm:$0xff]
    %v67 = vld [vmem:[%s1 + $0x160] sm:$0xff]
    %v68 = vld [vmem:[%s1 + $0x168] sm:$0xff]
    %v69 = vld [vmem:[%s1 + $0x170] sm:$0xff]
    %v70 = vld [vmem:[%s1 + $0x178] sm:$0xff]
    %v71 = vld [vmem:[%s1 + $0x180] sm:$0xff]
    %v72 = vld [vmem:[%s1 + $0x188] sm:$0xff]
    %v73 = vld [vmem:[%s1 + $0x190] sm:$0xff]
    %v74 = vld [vmem:[%s1 + $0x198] sm:$0xff]
    %v75 = vld [vmem:[%s1 + $0x1a0] sm:$0xff]
    %v76 = vld [vmem:[%s1 + $0x1a8] sm:$0xff]
    %v77 = vld [vmem:[%s1 + $0x1b0] sm:$0xff]
    %v78 = vld [vmem:[%s1 + $0x1b8] sm:$0xff]
    %v79 = vld [vmem:[%s1 + $0x1c0] sm:$0xff]
    %v80 = vld [vmem:[%s1 + $0x1c8] sm:$0xff]
    %v81 = vld [vmem:[%s1 + $0x1d0] sm:$0xff]
    %v82 = vld [vmem:[%s1 + $0x1d8] sm:$0xff]
    %v83 = vld [vmem:[%s1 + $0x1e0] sm:$0xff]
    %v84 = vld [vmem:[%s1 + $0x1e8] sm:$0xff]
    %v85 = vld [vmem:[%s1 + $0x1f0] sm:$0xff]
    %v86 = vld [vmem:[%s1 + $0x1f8] sm:$0xff]
    %v87 = vld [vmem:[%s1 + $0x200] sm:$0xff]
    %v88 = vld [vmem:[%s1 + $0x208] sm:$0xff]
    %v89 = vld [vmem:[%s1 + $0x210] sm:$0xff]
    %v90 = vld [vmem:[%s1 + $0x218] sm:$0xff]
    %v91 = vld [vmem:[%s1 + $0x220] sm:$0xff]
    %v92 = vld [vmem:[%s1 + $0x228] sm:$0xff]
    %v93 = vld [vmem:[%s1 + $0x230] sm:$0xff]
    %v94 = vld [vmem:[%s1 + $0x238] sm:$0xff]
    %v95 = vld [vmem:[%s1 + $0x240] sm:$0xff]
    %v96 = vld [vmem:[%s1 + $0x248] sm:$0xff]
    %v97 = vld [vmem:[%s1 + $0x250] sm:$0xff]
    %v98 = vld [vmem:[%s1 + $0x258] sm:$0xff]
    %v99 = vld [vmem:[%s1 + $0x260] sm:$0xff]
    %v100 = vld [vmem:[%s1 + $0x268] sm:$0xff]
    %v101 = vld [vmem:[%s1 + $0x270] sm:$0xff]
    %v102 = vld [vmem:[%s1 + $0x278] sm:$0xff]
    %v103 = vld [vmem:[%s1 + $0x280] sm:$0xff]
    %v104 = vld [vmem:[%s1 + $0x288] sm:$0xff]
    %v105 = vld [vmem:[%s1 + $0x290] sm:$0xff]
    %v106 = vld [vmem:[%s1 + $0x298] sm:$0xff]
    %v107 = vld [vmem:[%s1 + $0x2a0] sm:$0xff]
    %v108 = vld [vmem:[%s1 + $0x2a8] sm:$0xff]
    %v109 = vld [vmem:[%s1 + $0x2b0] sm:$0xff]
    %v110 = vld [vmem:[%s1 + $0x2b8] sm:$0xff]
    %v111 = vld [vmem:[%s1 + $0x2c0] sm:$0xff]
    %v112 = vld [vmem:[%s1 + $0x2c8] sm:$0xff]
    %v113 = vld [vmem:[%s1 + $0x2d0] sm:$0xff]
    %v114 = vld [vmem:[%s1 + $0x2d8] sm:$0xff]
    %v115 = vld [vmem:[%s1 + $0x2e0] sm:$0xff]
    %v116 = vld [vmem:[%s1 + $0x2e8] sm:$0xff]
    %v117 = vld [vmem:[%s1 + $0x2f0] sm:$0xff]
    %v118 = vld [vmem:[%s1 + $0x2f8] sm:$0xff]
    %v119 = vld [vmem:[%s1 + $0x300] sm:$0xff]
    %v120 = vld [vmem:[%s1 + $0x308] sm:$0xff]
    %v121 = vld [vmem:[%s1 + $0x310] sm:$0xff]
    %v122 = vld [vmem:[%s1 + $0x318] sm:$0xff]
    %v123 = vld [vmem:[%s1 + $0x320] sm:$0xff]
    %v124 = vld [vmem:[%s1 + $0x328] sm:$0xff]
    %v125 = vld [vmem:[%s1 + $0x330] sm:$0xff]
    %v126 = vld [vmem:[%s1 + $0x338] sm:$0xff]
    %v127 = vld [vmem:[%s1 + $0x340] sm:$0xff]
    %v128 = vld [vmem:[%s1 + $0x348] sm:$0xff]
    %v129 = vld [vmem:[%s1 + $0x350] sm:$0xff]
    %v130 = vld [vmem:[%s1 + $0x358] sm:$0xff]
    %v131 = vld [vmem:[%s1 + $0x360] sm:$0xff]
    %v132 = vld [vmem:[%s1 + $0x368] sm:$0xff]
    %v133 = vld [vmem:[%s1 + $0x370] sm:$0xff]
    %v134 = vld [vmem:[%s1 + $0x378] sm:$0xff]
    %v135 = vld [vmem:[%s1 + $0x380] sm:$0xff]
    %v136 = vld [vmem:[%s1 + $0x388] sm:$0xff]
    %v137 = vld [vmem:[%s1 + $0x390] sm:$0xff]
    %v138 = vld [vmem:[%s1 + $0x398] sm:$0xff]
    %v139 = vld [vmem:[%s1 + $0x3a0] sm:$0xff]
    %v140 = vld [vmem:[%s1 + $0x3a8] sm:$0xff]
    %v141 = vld [vmem:[%s1 + $0x3b0] sm:$0xff]
    %v142 = vld [vmem:[%s1 + $0x3b8] sm:$0xff]
    %v143 = vld [vmem:[%s1 + $0x3c0] sm:$0xff]
    %v144 = vld [vmem:[%s1 + $0x3c8] sm:$0xff]
    %v145 = vld [vmem:[%s1 + $0x3d0] sm:$0xff]
    %v146 = vld [vmem:[%s1 + $0x3d8] sm:$0xf]
    %v147 = vld [vmem:[%s2] sm:$0x1]
    %v149 = vlaneseq
    %v150 = vshrl.u32 %v149, 7
    %v151 = vsub.s32 0, %v150
    %v152 = vrot.slane %v147, %v151
    %v156 = vcombine.high %v21, %v21
    %v158 = vunpack.c.l.s4 1983009808
    %v159 = vunpack.c.0.s8 %v158
    %v160 = vlaneseq
    %v161 = vshrl.u32 %v160, 7
    %v162 = vsub.s32 %v159, %v161
    %v163 = vrot.slane %v21, %v162
    %v165 = vunpack.c.l.s4 1983009808
    %v166 = vunpack.c.0.s8 %v165
    %v167 = vlaneseq
    %v168 = vshrl.u32 %v167, 7
    %v169 = vsub.s32 %v166, %v168
    %v170 = vrot.slane %v156, %v169
    %v171 = vcombine.high %v163, %v163
    %v172 = vcombine.high %v170, %v170
    %v173 = vcombine.high %v22, %v22
    %v175 = vunpack.c.l.s4 1983009808
    %v176 = vunpack.c.0.s8 %v175
    %v177 = vlaneseq
    %v178 = vshrl.u32 %v177, 7
    %v179 = vsub.s32 %v176, %v178
    %v180 = vrot.slane %v22, %v179
    %v182 = vunpack.c.l.s4 1983009808
    %v183 = vunpack.c.0.s8 %v182
    %v184 = vlaneseq
    %v185 = vshrl.u32 %v184, 7
    %v186 = vsub.s32 %v183, %v185
    %v187 = vrot.slane %v173, %v186
    %v188 = vcombine.high %v180, %v180
    %v189 = vcombine.high %v187, %v187
    %vm197 = vcmask 752640
    %v198 = vsel %vm197, %v189, 0
    %vm200 = vcmask 1043456
    %v202 = vsel %vm200, %v146, 0
    %204 = vmatprep.subr.mxu0 0.0
    %205 = vmatpush1.msra.mxu0 %v23
    %206 = vmatprep.subr.mxu0 0.0
    %207 = vmatpush1.msra.mxu0 %v24
    %208 = vmatprep.subr.mxu0 0.0
    %209 = vmatpush1.msra.mxu0 %v25
    %210 = vmatprep.subr.mxu0 0.0
    %211 = vmatpush1.msra.mxu0 %v26
    %212 = vmatprep.subr.mxu0 0.0
    %213 = vmatpush1.msra.mxu0 %v27
    %214 = vmatprep.subr.mxu0 0.0
    %215 = vmatpush1.msra.mxu0 %v28
    %216 = vmatprep.subr.mxu0 0.0
    %217 = vmatpush1.msra.mxu0 %v29
    %218 = vmatprep.subr.mxu0 0.0
    %219 = vmatpush1.msra.mxu0 %v30
    %220 = vmatprep.subr.mxu0 0.0
    %221 = vmatpush1.msra.mxu0 %v31
    %222 = vmatprep.subr.mxu0 0.0
    %223 = vmatpush1.msra.mxu0 %v32
    %224 = vmatprep.subr.mxu0 0.0
    %225 = vmatpush1.msra.mxu0 %v33
    %226 = vmatprep.subr.mxu0 0.0
    %227 = vmatpush1.msra.mxu0 %v34
    %228 = vmatprep.subr.mxu0 0.0
    %229 = vmatpush1.msra.mxu0 %v35
    %230 = vmatprep.subr.mxu0 0.0
    %231 = vmatpush1.msra.mxu0 %v36
    %232 = vmatprep.subr.mxu0 0.0
    %233 = vmatpush1.msra.mxu0 %v37
    %234 = vmatprep.subr.mxu0 0.0
    %235 = vmatpush1.msra.mxu0 %v38
    %236 = vmatprep.subr.mxu0 0.0
    %237 = vmatpush1.msra.mxu0 %v39
    %238 = vmatprep.subr.mxu0 0.0
    %239 = vmatpush1.msra.mxu0 %v40
    %240 = vmatprep.subr.mxu0 0.0
    %241 = vmatpush1.msra.mxu0 %v41
    %242 = vmatprep.subr.mxu0 0.0
    %243 = vmatpush1.msra.mxu0 %v42
    %244 = vmatprep.subr.mxu0 0.0
    %245 = vmatpush1.msra.mxu0 %v43
    %246 = vmatprep.subr.mxu0 0.0
    %247 = vmatpush1.msra.mxu0 %v44
    %248 = vmatprep.subr.mxu0 0.0
    %249 = vmatpush1.msra.mxu0 %v45
    %250 = vmatprep.subr.mxu0 0.0
    %251 = vmatpush1.msra.mxu0 %v46
    %252 = vmatprep.subr.mxu0 0.0
    %253 = vmatpush1.msra.mxu0 %v47
    %254 = vmatprep.subr.mxu0 0.0
    %255 = vmatpush1.msra.mxu0 %v48
    %256 = vmatprep.subr.mxu0 0.0
    %257 = vmatpush1.msra.mxu0 %v49
    %258 = vmatprep.subr.mxu0 0.0
    %259 = vmatpush1.msra.mxu0 %v50
    %260 = vmatprep.subr.mxu0 0.0
    %261 = vmatpush1.msra.mxu0 %v51
    %262 = vmatprep.subr.mxu0 0.0
    %263 = vmatpush1.msra.mxu0 %v52
    %264 = vmatprep.subr.mxu0 0.0
    %265 = vmatpush1.msra.mxu0 %v53
    %266 = vmatprep.subr.mxu0 0.0
    %267 = vmatpush1.msra.mxu0 %v54
    %268 = vmatprep.mubr.f32.mxu0 %v171
    %269 = vmatmul.mubr.f32.gmra.mrb[0].mxu0 %v163
    %v270 = vpop.f32.mrb[0].mxu0
    %v271 = vadd.f32 %v152, %v270
    %v272 = vpop.f32.mrb[0].mxu0
    %273 = vdwg.mxu0
    %274 = vmatprep.subr.mxu0 0.0
    %275 = vmatpush1.msra.mxu0 %v55
    %276 = vmatprep.subr.mxu0 0.0
    %277 = vmatpush1.msra.mxu0 %v56
    %278 = vmatprep.subr.mxu0 0.0
    %279 = vmatpush1.msra.mxu0 %v57
    %280 = vmatprep.subr.mxu0 0.0
    %281 = vmatpush1.msra.mxu0 %v58
    %282 = vmatprep.subr.mxu0 0.0
    %283 = vmatpush1.msra.mxu0 %v59
    %284 = vmatprep.subr.mxu0 0.0
    %285 = vmatpush1.msra.mxu0 %v60
    %286 = vmatprep.subr.mxu0 0.0
    %287 = vmatpush1.msra.mxu0 %v61
    %288 = vmatprep.subr.mxu0 0.0
    %289 = vmatpush1.msra.mxu0 %v62
    %290 = vmatprep.subr.mxu0 0.0
    %291 = vmatpush1.msra.mxu0 %v63
    %292 = vmatprep.subr.mxu0 0.0
    %293 = vmatpush1.msra.mxu0 %v64
    %294 = vmatprep.subr.mxu0 0.0
    %295 = vmatpush1.msra.mxu0 %v65
    %296 = vmatprep.subr.mxu0 0.0
    %297 = vmatpush1.msra.mxu0 %v66
    %298 = vmatprep.subr.mxu0 0.0
    %299 = vmatpush1.msra.mxu0 %v67
    %300 = vmatprep.subr.mxu0 0.0
    %301 = vmatpush1.msra.mxu0 %v68
    %302 = vmatprep.subr.mxu0 0.0
    %303 = vmatpush1.msra.mxu0 %v69
    %304 = vmatprep.subr.mxu0 0.0
    %305 = vmatpush1.msra.mxu0 %v70
    %306 = vmatprep.subr.mxu0 0.0
    %307 = vmatpush1.msra.mxu0 %v71
    %308 = vmatprep.subr.mxu0 0.0
    %309 = vmatpush1.msra.mxu0 %v72
    %310 = vmatprep.subr.mxu0 0.0
    %311 = vmatpush1.msra.mxu0 %v73
    %312 = vmatprep.subr.mxu0 0.0
    %313 = vmatpush1.msra.mxu0 %v74
    %314 = vmatprep.subr.mxu0 0.0
    %315 = vmatpush1.msra.mxu0 %v75
    %316 = vmatprep.subr.mxu0 0.0
    %317 = vmatpush1.msra.mxu0 %v76
    %318 = vmatprep.subr.mxu0 0.0
    %319 = vmatpush1.msra.mxu0 %v77
    %320 = vmatprep.subr.mxu0 0.0
    %321 = vmatpush1.msra.mxu0 %v78
    %322 = vmatprep.subr.mxu0 0.0
    %323 = vmatpush1.msra.mxu0 %v79
    %324 = vmatprep.subr.mxu0 0.0
    %325 = vmatpush1.msra.mxu0 %v80
    %326 = vmatprep.subr.mxu0 0.0
    %327 = vmatpush1.msra.mxu0 %v81
    %328 = vmatprep.subr.mxu0 0.0
    %329 = vmatpush1.msra.mxu0 %v82
    %330 = vmatprep.subr.mxu0 0.0
    %331 = vmatpush1.msra.mxu0 %v83
    %332 = vmatprep.subr.mxu0 0.0
    %333 = vmatpush1.msra.mxu0 %v84
    %334 = vmatprep.subr.mxu0 0.0
    %335 = vmatpush1.msra.mxu0 %v85
    %336 = vmatprep.subr.mxu0 0.0
    %337 = vmatpush1.msra.mxu0 %v86
    %338 = vmatprep.mubr.f32.mxu0 %v172
    %339 = vmatmul.mubr.f32.gmra.mrb[0].mxu0 %v170
    %v340 = vpop.f32.mrb[0].mxu0
    %v341 = vadd.f32 %v271, %v340
    %v342 = vpop.f32.mrb[0].mxu0
    %343 = vdwg.mxu0
    %344 = vmatprep.subr.mxu0 0.0
    %345 = vmatpush1.msra.mxu0 %v87
    %346 = vmatprep.subr.mxu0 0.0
    %347 = vmatpush1.msra.mxu0 %v88
    %348 = vmatprep.subr.mxu0 0.0
    %349 = vmatpush1.msra.mxu0 %v89
    %350 = vmatprep.subr.mxu0 0.0
    %351 = vmatpush1.msra.mxu0 %v90
    %352 = vmatprep.subr.mxu0 0.0
    %353 = vmatpush1.msra.mxu0 %v91
    %354 = vmatprep.subr.mxu0 0.0
    %355 = vmatpush1.msra.mxu0 %v92
    %356 = vmatprep.subr.mxu0 0.0
    %357 = vmatpush1.msra.mxu0 %v93
    %358 = vmatprep.subr.mxu0 0.0
    %359 = vmatpush1.msra.mxu0 %v94
    %360 = vmatprep.subr.mxu0 0.0
    %361 = vmatpush1.msra.mxu0 %v95
    %362 = vmatprep.subr.mxu0 0.0
    %363 = vmatpush1.msra.mxu0 %v96
    %364 = vmatprep.subr.mxu0 0.0
    %365 = vmatpush1.msra.mxu0 %v97
    %366 = vmatprep.subr.mxu0 0.0
    %367 = vmatpush1.msra.mxu0 %v98
    %368 = vmatprep.subr.mxu0 0.0
    %369 = vmatpush1.msra.mxu0 %v99
    %370 = vmatprep.subr.mxu0 0.0
    %371 = vmatpush1.msra.mxu0 %v100
    %372 = vmatprep.subr.mxu0 0.0
    %373 = vmatpush1.msra.mxu0 %v101
    %374 = vmatprep.subr.mxu0 0.0
    %375 = vmatpush1.msra.mxu0 %v102
    %376 = vmatprep.subr.mxu0 0.0
    %377 = vmatpush1.msra.mxu0 %v103
    %378 = vmatprep.subr.mxu0 0.0
    %379 = vmatpush1.msra.mxu0 %v104
    %380 = vmatprep.subr.mxu0 0.0
    %381 = vmatpush1.msra.mxu0 %v105
    %382 = vmatprep.subr.mxu0 0.0
    %383 = vmatpush1.msra.mxu0 %v106
    %384 = vmatprep.subr.mxu0 0.0
    %385 = vmatpush1.msra.mxu0 %v107
    %386 = vmatprep.subr.mxu0 0.0
    %387 = vmatpush1.msra.mxu0 %v108
    %388 = vmatprep.subr.mxu0 0.0
    %389 = vmatpush1.msra.mxu0 %v109
    %390 = vmatprep.subr.mxu0 0.0
    %391 = vmatpush1.msra.mxu0 %v110
    %392 = vmatprep.subr.mxu0 0.0
    %393 = vmatpush1.msra.mxu0 %v111
    %394 = vmatprep.subr.mxu0 0.0
    %395 = vmatpush1.msra.mxu0 %v112
    %396 = vmatprep.subr.mxu0 0.0
    %397 = vmatpush1.msra.mxu0 %v113
    %398 = vmatprep.subr.mxu0 0.0
    %399 = vmatpush1.msra.mxu0 %v114
    %400 = vmatprep.subr.mxu0 0.0
    %401 = vmatpush1.msra.mxu0 %v115
    %402 = vmatprep.subr.mxu0 0.0
    %403 = vmatpush1.msra.mxu0 %v116
    %404 = vmatprep.subr.mxu0 0.0
    %405 = vmatpush1.msra.mxu0 %v117
    %406 = vmatprep.subr.mxu0 0.0
    %407 = vmatpush1.msra.mxu0 %v118
    %408 = vmatprep.mubr.f32.mxu0 %v188
    %409 = vmatmul.mubr.f32.gmra.mrb[0].mxu0 %v180
    %v410 = vpop.f32.mrb[0].mxu0
    %v411 = vadd.f32 %v341, %v410
    %v412 = vpop.f32.mrb[0].mxu0
    %413 = vdwg.mxu0
    %414 = vmatprep.subr.mxu0 0.0
    %415 = vmatpush1.msra.mxu0 %v119
    %416 = vmatprep.subr.mxu0 0.0
    %417 = vmatpush1.msra.mxu0 %v120
    %418 = vmatprep.subr.mxu0 0.0
    %419 = vmatpush1.msra.mxu0 %v121
    %420 = vmatprep.subr.mxu0 0.0
    %421 = vmatpush1.msra.mxu0 %v122
    %422 = vmatprep.subr.mxu0 0.0
    %423 = vmatpush1.msra.mxu0 %v123
    %424 = vmatprep.subr.mxu0 0.0
    %425 = vmatpush1.msra.mxu0 %v124
    %426 = vmatprep.subr.mxu0 0.0
    %427 = vmatpush1.msra.mxu0 %v125
    %428 = vmatprep.subr.mxu0 0.0
    %429 = vmatpush1.msra.mxu0 %v126
    %430 = vmatprep.subr.mxu0 0.0
    %431 = vmatpush1.msra.mxu0 %v127
    %432 = vmatprep.subr.mxu0 0.0
    %433 = vmatpush1.msra.mxu0 %v128
    %434 = vmatprep.subr.mxu0 0.0
    %435 = vmatpush1.msra.mxu0 %v129
    %436 = vmatprep.subr.mxu0 0.0
    %437 = vmatpush1.msra.mxu0 %v130
    %438 = vmatprep.subr.mxu0 0.0
    %439 = vmatpush1.msra.mxu0 %v131
    %440 = vmatprep.subr.mxu0 0.0
    %441 = vmatpush1.msra.mxu0 %v132
    %442 = vmatprep.subr.mxu0 0.0
    %443 = vmatpush1.msra.mxu0 %v133
    %444 = vmatprep.subr.mxu0 0.0
    %445 = vmatpush1.msra.mxu0 %v134
    %446 = vmatprep.subr.mxu0 0.0
    %447 = vmatpush1.msra.mxu0 %v135
    %448 = vmatprep.subr.mxu0 0.0
    %449 = vmatpush1.msra.mxu0 %v136
    %450 = vmatprep.subr.mxu0 0.0
    %451 = vmatpush1.msra.mxu0 %v137
    %452 = vmatprep.subr.mxu0 0.0
    %453 = vmatpush1.msra.mxu0 %v138
    %454 = vmatprep.subr.mxu0 0.0
    %455 = vmatpush1.msra.mxu0 %v139
    %456 = vmatprep.subr.mxu0 0.0
    %457 = vmatpush1.msra.mxu0 %v140
    %458 = vmatprep.subr.mxu0 0.0
    %459 = vmatpush1.msra.mxu0 %v141
    %460 = vmatprep.subr.mxu0 0.0
    %461 = vmatpush1.msra.mxu0 %v142
    %462 = vmatprep.subr.mxu0 0.0
    %463 = vmatpush1.msra.mxu0 %v143
    %464 = vmatprep.subr.mxu0 0.0
    %465 = vmatpush1.msra.mxu0 %v144
    %466 = vmatprep.subr.mxu0 0.0
    %467 = vmatpush1.msra.mxu0 %v145
    %468 = vmatprep.subr.mxu0 0.0
    %469 = vmatpush1.msra.mxu0 %v202
    %470 = vmatprep.subr.mxu0 0.0
    %471 = vmatpush1.msra.mxu0 0.0
    %472 = vmatprep.subr.mxu0 0.0
    %473 = vmatpush1.msra.mxu0 0.0
    %474 = vmatprep.subr.mxu0 0.0
    %475 = vmatpush1.msra.mxu0 0.0
    %476 = vmatprep.subr.mxu0 0.0
    %477 = vmatpush1.msra.mxu0 0.0
    %478 = vmatprep.mubr.f32.mxu0 %v198
    %479 = vmatmul.mubr.f32.gmra.mrb[0].mxu0 %v187
    %v480 = vpop.f32.mrb[0].mxu0
    %v481 = vadd.f32 %v411, %v480
    %v482 = vpop.f32.mrb[0].mxu0
    %483 = vdwg.mxu0
    %v484 = vmax.f32 %v481, 0.0
    %v485 = vld [vmem:[%s3] sm:$0xff]
    %v486 = vld [vmem:[%s3 + $0x8] sm:$0xff]
    %v487 = vld [vmem:[%s3 + $0x10] sm:$0xff]
    %v488 = vld [vmem:[%s3 + $0x18] sm:$0xff]
    %v489 = vld [vmem:[%s3 + $0x20] sm:$0xff]
    %v490 = vld [vmem:[%s3 + $0x28] sm:$0xff]
    %v491 = vld [vmem:[%s3 + $0x30] sm:$0xff]
    %v492 = vld [vmem:[%s3 + $0x38] sm:$0xff]
    %v493 = vld [vmem:[%s3 + $0x40] sm:$0xff]
    %v494 = vld [vmem:[%s3 + $0x48] sm:$0xff]
    %v495 = vld [vmem:[%s3 + $0x50] sm:$0xff]
    %v496 = vld [vmem:[%s3 + $0x58] sm:$0xff]
    %v497 = vld [vmem:[%s3 + $0x60] sm:$0xff]
    %v498 = vld [vmem:[%s3 + $0x68] sm:$0xff]
    %v499 = vld [vmem:[%s3 + $0x70] sm:$0x3]
    %v500 = vld [vmem:[%s4] sm:$0x1]
    %v502 = vlaneseq
    %v503 = vshrl.u32 %v502, 7
    %v504 = vsub.s32 0, %v503
    %v505 = vrot.slane %v500, %v504
    %vm507 = vcmask 932864
    %v509 = vsel %vm507, %v484, 0
    %vm511 = vcmask 1041408
    %v513 = vsel %vm511, %v499, 0
    %515 = vmatprep.subr.mxu0 0.0
    %516 = vmatpush1.msra.mxu0 %v485
    %517 = vmatprep.subr.mxu0 0.0
    %518 = vmatpush1.msra.mxu0 %v486
    %519 = vmatprep.subr.mxu0 0.0
    %520 = vmatpush1.msra.mxu0 %v487
    %521 = vmatprep.subr.mxu0 0.0
    %522 = vmatpush1.msra.mxu0 %v488
    %523 = vmatprep.subr.mxu0 0.0
    %524 = vmatpush1.msra.mxu0 %v489
    %525 = vmatprep.subr.mxu0 0.0
    %526 = vmatpush1.msra.mxu0 %v490
    %527 = vmatprep.subr.mxu0 0.0
    %528 = vmatpush1.msra.mxu0 %v491
    %529 = vmatprep.subr.mxu0 0.0
    %530 = vmatpush1.msra.mxu0 %v492
    %531 = vmatprep.subr.mxu0 0.0
    %532 = vmatpush1.msra.mxu0 %v493
    %533 = vmatprep.subr.mxu0 0.0
    %534 = vmatpush1.msra.mxu0 %v494
    %535 = vmatprep.subr.mxu0 0.0
    %536 = vmatpush1.msra.mxu0 %v495
    %537 = vmatprep.subr.mxu0 0.0
    %538 = vmatpush1.msra.mxu0 %v496
    %539 = vmatprep.subr.mxu0 0.0
    %540 = vmatpush1.msra.mxu0 %v497
    %541 = vmatprep.subr.mxu0 0.0
    %542 = vmatpush1.msra.mxu0 %v498
    %543 = vmatprep.subr.mxu0 0.0
    %544 = vmatpush1.msra.mxu0 %v513
    %545 = vmatprep.subr.mxu0 0.0
    %546 = vmatpush1.msra.mxu0 0.0
    %547 = vmatprep.subr.mxu0 0.0
    %548 = vmatpush1.msra.mxu0 0.0
    %549 = vmatprep.subr.mxu0 0.0
    %550 = vmatpush1.msra.mxu0 0.0
    %551 = vmatprep.subr.mxu0 0.0
    %552 = vmatpush1.msra.mxu0 0.0
    %553 = vmatprep.subr.mxu0 0.0
    %554 = vmatpush1.msra.mxu0 0.0
    %555 = vmatprep.subr.mxu0 0.0
    %556 = vmatpush1.msra.mxu0 0.0
    %557 = vmatprep.subr.mxu0 0.0
    %558 = vmatpush1.msra.mxu0 0.0
    %559 = vmatprep.subr.mxu0 0.0
    %560 = vmatpush1.msra.mxu0 0.0
    %561 = vmatprep.subr.mxu0 0.0
    %562 = vmatpush1.msra.mxu0 0.0
    %563 = vmatprep.subr.mxu0 0.0
    %564 = vmatpush1.msra.mxu0 0.0
    %565 = vmatprep.subr.mxu0 0.0
    %566 = vmatpush1.msra.mxu0 0.0
    %567 = vmatprep.subr.mxu0 0.0
    %568 = vmatpush1.msra.mxu0 0.0
    %569 = vmatprep.subr.mxu0 0.0
    %570 = vmatpush1.msra.mxu0 0.0
    %571 = vmatprep.subr.mxu0 0.0
    %572 = vmatpush1.msra.mxu0 0.0
    %573 = vmatprep.subr.mxu0 0.0
    %574 = vmatpush1.msra.mxu0 0.0
    %575 = vmatprep.subr.mxu0 0.0
    %576 = vmatpush1.msra.mxu0 0.0
    %577 = vmatprep.subr.mxu0 0.0
    %578 = vmatpush1.msra.mxu0 0.0
    %579 = vmatprep.mubr.f32.mxu0 0.0
    %580 = vmatmul.mubr.f32.gmra.mrb[0].mxu0 %v509
    %v581 = vpop.f32.mrb[0].mxu0
    %v582 = vadd.f32 %v505, %v581
    %v583 = vpop.f32.mrb[0].mxu0
    %584 = vdwg.mxu0
    %vm585 = vcmask 9216
    %586 = vst.msk [vmem:[#allocation2] sm:$0x3] %vm585, %v582
    // Predicated region
    $region22: #{tpu_custom_call.1} parent=1 // pred_check
      _
    $region23: #{tpu_custom_call.1} parent=1 // pred_check_branch
      %588 = sbr.rel (0) target = $region25
    $region24: #{tpu_custom_call.1} parent=1 // pred_region
      %s590 = ssub.s32 32, 32
      %591 = vsyncadd [#allocation3], %s590
      %s593 = sshll.u32 [#allocation2], 4
      %s594 = int_to_ptr.vmem [resolvable:$true] %s593
      %596 = dma.vmem_to_hbm [thread:$0]  %s594, 32, %s5, [#allocation3]
    $region25: #{tpu_custom_call.1} parent=1 // pred_fallthru
      _
    // Predicated region
    $region26: #{tpu_custom_call.1} parent=1 // pred_check
      _
    $region27: #{tpu_custom_call.1} parent=1 // pred_check_branch
      %598 = sbr.rel (0) target = $region29
    $region28: #{tpu_custom_call.1} parent=1 // pred_region
      %599 = dma.done [#allocation3], 32
    $region29: #{tpu_custom_call.1} parent=1 // pred_fallthru
      _
    %600 = vsyncpa [#allocation3], 1

</llo_original>
